<compile_context>
chip_gen: v5e
topology: v5e:2x2
jax: 0.10.0
libtpu: 0.0.40
codegen_flags: <defaults>
</compile_context>

<pallas_src>
import jax
import jax.numpy as jnp
import numpy as np
from jax.experimental import pallas as pl
from jax.experimental.pallas import tpu as pltpu


def conv_pool_kernel(x_ref, m_ref, nf_ref, nl_ref, invlen_ref,
                     w0_ref, w1_ref, w2_ref, pooled_ref):
    """Masked conv1d(k=3) + ReLU + masked mean-pool for one batch tile.

    x_ref      : (Bt*L, D)  hidden states, batch*seq flattened onto MXU rows
    m_ref      : (Bt*L, 1)  attention mask (0/1, f32)
    nf_ref     : (Bt*L, 1)  "not first token of its sequence" mask (grid-invariant)
    nl_ref     : (Bt*L, 1)  "not last token of its sequence" mask (grid-invariant)
    invlen_ref : (Bt, 1)    precomputed 1 / max(sequence length, 1)
    w{0,1,2}   : (D, D)     conv taps k=0,1,2 as (in, out)
    pooled_ref : (Bt, D)    masked mean-pooled conv+ReLU output (f32)
    """
    M, D = x_ref.shape
    Bt = pooled_ref.shape[0]
    L = M // Bt

    m = m_ref[...]                                     # (M, 1) f32
    xm = x_ref[...] * m                                # mask BEFORE the conv
    xm_mm = xm.astype(w1_ref.dtype)                    # cast only matmul operand

    # conv[t] = W0 @ x[t-1] + W1 @ x[t] + W2 @ x[t+1]
    # Three accumulating (M, D) @ (D, D) tap matmuls; shifts via XLU roll,
    # sequence boundaries zeroed by the hoisted not_first / not_last masks
    # (the wrap-around of roll only ever crosses sequence boundaries, which
    # those masks kill).
    conv = jnp.dot(xm_mm, w1_ref[...], preferred_element_type=jnp.float32)

    y0 = jnp.dot(xm_mm, w0_ref[...], preferred_element_type=jnp.float32)
    conv += pltpu.roll(y0, shift=1, axis=0) * nf_ref[...]          # uses x[t-1]

    y2 = jnp.dot(xm_mm, w2_ref[...], preferred_element_type=jnp.float32)
    conv += pltpu.roll(y2, shift=M - 1, axis=0) * nl_ref[...]      # uses x[t+1]

    relu = jnp.maximum(conv, 0.0) * m                  # mask AFTER ReLU

    # Sum-pool over each length-L sequence: sublane (XLU) reduce, hides under
    # the conv matmuls.  Divide by precomputed 1/length.
    pooled_sum = jnp.sum(relu.reshape(Bt, L, D), axis=1)           # (Bt, D)
    pooled_ref[...] = (pooled_sum * invlen_ref[...]).astype(pooled_ref.dtype)


def conv_key_encoder(hidden_states, attention_mask, conv_weight, linear_weight,
                     *, matmul_dtype=jnp.bfloat16, batch_tile=None,
                     single_buffer_weights=False):
    """hidden_states: (B, L, D); attention_mask: (B, L);
    conv_weight: (D, D, 3) [out, in, k]; linear_weight: (K, D).  Returns (B, K)."""
    B, L, D = hidden_states.shape
    Bt = B if batch_tile is None else batch_tile
    assert B % Bt == 0, "batch_tile must divide batch"
    num_tiles = B // Bt
    if num_tiles > 1:
        # Blocks smaller than the full array must keep the sublane axis a
        # multiple of 8 for unmasked lane-dense stores.
        assert Bt % 8 == 0, "batch_tile must be a multiple of 8 when tiling the batch"
    M = Bt * L

    mdt = jnp.float32 if matmul_dtype is None else matmul_dtype

    # (out, in, k) -> per-tap (in, out) so the matmul is (M, D_in) @ (D_in, D_out).
    w_taps = jnp.transpose(conv_weight, (1, 0, 2)).astype(mdt)      # (in, out, k)
    w0, w1, w2 = w_taps[:, :, 0], w_taps[:, :, 1], w_taps[:, :, 2]

    x_flat = hidden_states.reshape(B * L, D)
    m_flat = attention_mask.astype(jnp.float32).reshape(B * L, 1)

    # Hoisted grid-invariant boundary masks (same for every batch tile).
    pos = jnp.arange(M, dtype=jnp.int32) % L
    not_first = (pos != 0).astype(jnp.float32).reshape(M, 1)
    not_last = (pos != L - 1).astype(jnp.float32).reshape(M, 1)

    # 1/length precomputed once in XLA.  max(.,1) guards all-padding rows
    # (reference would divide by zero there).
    lengths = jnp.sum(attention_mask.astype(jnp.float32), axis=1, keepdims=True)
    inv_len = 1.0 / jnp.maximum(lengths, 1.0)                        # (B, 1)

    # Explicit VMEM budget: double-buffered tiles + weights + live intermediates,
    # 2x headroom, capped at 48 MiB so it is always legal on v7x's 64 MiB VMEM.
    w_itemsize = jnp.dtype(mdt).itemsize
    tile_bytes = M * D * 4 + 3 * M * 4 + Bt * 4 + Bt * D * 4
    weight_bytes = 3 * D * D * w_itemsize
    interm_bytes = 4 * M * D * 4
    vmem_needed = 2 * tile_bytes + 2 * weight_bytes + interm_bytes
    vmem_limit = int(min(48 * 1024 * 1024, max(16 * 1024 * 1024, 2 * vmem_needed)))

    # Grid-invariant conv weights: block index never changes.  On v7x at large
    # D, single-buffer them (only one DMA is ever issued anyway).
    w_kwargs = {"pipeline_mode": pl.Buffered(1)} if single_buffer_weights else {}
    w_spec = pl.BlockSpec((D, D), lambda i: (0, 0), **w_kwargs)

    pooled = pl.pallas_call(
        conv_pool_kernel,
        out_shape=jax.ShapeDtypeStruct((B, D), jnp.float32),
        grid_spec=pltpu.PrefetchScalarGridSpec(
            num_scalar_prefetch=0,
            grid=(num_tiles,),
            in_specs=[
                pl.BlockSpec((M, D), lambda i: (i, 0)),      # x tile
                pl.BlockSpec((M, 1), lambda i: (i, 0)),      # mask tile
                pl.BlockSpec((M, 1), lambda i: (0, 0)),      # not_first (invariant)
                pl.BlockSpec((M, 1), lambda i: (0, 0)),      # not_last (invariant)
                pl.BlockSpec((Bt, 1), lambda i: (i, 0)),     # 1/length
                w_spec,                                      # tap 0
                w_spec,                                      # tap 1
                w_spec,                                      # tap 2
            ],
            out_specs=pl.BlockSpec((Bt, D), lambda i: (i, 0)),
        ),
        compiler_params=pltpu.CompilerParams(
            dimension_semantics=("parallel",),
            vmem_limit_bytes=vmem_limit),
    )(x_flat, m_flat, not_first, not_last, inv_len, w0, w1, w2)

    # Tiny (B, D) @ (D, K) final linear stays in XLA: avoids a lane-sparse
    # (K < 128) masked store inside the kernel and keeps the batch axis parallel.
    out = jnp.dot(pooled, jnp.transpose(linear_weight).astype(jnp.float32),
                  precision=jax.lax.Precision.HIGHEST)
    return out.astype(hidden_states.dtype)


def reference(hidden_states, attention_mask, conv_weight, linear_weight):
    """Pure-JAX reference mirroring the PyTorch forward (NCW conv)."""
    mask = attention_mask.astype(hidden_states.dtype)                           # (B, L)
    masked_hidden = jnp.transpose(hidden_states, (0, 2, 1)) * mask[:, None, :]  # (B, D, L)
    conv_out = jax.lax.conv_general_dilated(
        masked_hidden, conv_weight, window_strides=(1,), padding="SAME",
        dimension_numbers=("NCH", "OIH", "NCH"),
        precision=jax.lax.Precision.HIGHEST)                                    # (B, D, L)
    relu_out = jnp.maximum(conv_out, 0.0) * mask[:, None, :]
    sum_pooled = jnp.sum(relu_out, axis=2)                                      # (B, D)
    lengths = jnp.sum(mask, axis=1)                                             # (B,)
    mean_pooled = sum_pooled / lengths[:, None]
    return jnp.dot(mean_pooled, linear_weight.T,
                   precision=jax.lax.Precision.HIGHEST)                         # (B, K)


if __name__ == "__main__":
    # Small but multi-tile: batch_tile=8 -> grid of 2 "parallel" steps, every
    # block (8,128)-legal (D blocks equal the full array dim).
    B, L, D, K = 16, 8, 32, 16   # batch, seq, d_model, d_key

    key = jax.random.PRNGKey(0)
    k_h, k_cw, k_lw = jax.random.split(key, 3)

    hidden_states = jax.random.normal(k_h, (B, L, D), dtype=jnp.float32)
    # deterministic ragged mask: first `valid_lens[b]` tokens valid, rest padding
    valid_lens = (jnp.arange(B, dtype=jnp.int32) % L) + 1            # 1..L
    attention_mask = (jnp.arange(L)[None, :] < valid_lens[:, None]).astype(jnp.float32)

    conv_weight = 0.05 * jax.random.normal(k_cw, (D, D, 3), dtype=jnp.float32)   # (out, in, k)
    linear_weight = 0.05 * jax.random.normal(k_lw, (K, D), dtype=jnp.float32)    # (d_key, d_model)

    ref = reference(hidden_states, attention_mask, conv_weight, linear_weight)

    # f32 conv-matmul path: tight check against the HIGHEST-precision reference.
    out_f32 = conv_key_encoder(hidden_states, attention_mask, conv_weight, linear_weight,
                               matmul_dtype=jnp.float32, batch_tile=8)
    out_f32 = jax.block_until_ready(out_f32)
    np.testing.assert_allclose(np.asarray(out_f32), np.asarray(ref), rtol=1e-2, atol=1e-2)

    # default bf16 conv-matmul path (MXU-native on all generations), f32 accumulation.
    out_bf16 = conv_key_encoder(hidden_states, attention_mask, conv_weight, linear_weight,
                                batch_tile=8)
    out_bf16 = jax.block_until_ready(out_bf16)
    np.testing.assert_allclose(np.asarray(out_bf16), np.asarray(ref), rtol=5e-2, atol=5e-2)

    print("KERNEL_OK")
</pallas_src>

<mosaic_0001>
module attributes {stable_mosaic.version = 11 : i64} {
  func.func @conv_pool_kernel(%arg0: i32, %arg1: memref<64x32xf32, #tpu.memory_space<vmem>>, %arg2: memref<64x1xf32, #tpu.memory_space<vmem>>, %arg3: memref<64x1xf32, #tpu.memory_space<vmem>>, %arg4: memref<64x1xf32, #tpu.memory_space<vmem>>, %arg5: memref<8x1xf32, #tpu.memory_space<vmem>>, %arg6: memref<32x32xf32, #tpu.memory_space<vmem>>, %arg7: memref<32x32xf32, #tpu.memory_space<vmem>>, %arg8: memref<32x32xf32, #tpu.memory_space<vmem>>, %arg9: memref<8x32xf32, #tpu.memory_space<vmem>>) attributes {dimension_semantics = [#tpu.dimension_semantics<parallel>], iteration_bounds = array<i64: 2>, scalar_prefetch = 0 : i64, scratch_operands = 0 : i64, tpu.core_type = #tpu.core_type<tc>, window_params = [{transform_indices = @transform_0, window_bounds = array<i64: 64, 32>}, {transform_indices = @transform_1, window_bounds = array<i64: 64, 1>}, {pipeline_mode = #tpu.pipeline_mode<synchronous>, transform_indices = @transform_2, window_bounds = array<i64: 64, 1>}, {pipeline_mode = #tpu.pipeline_mode<synchronous>, transform_indices = @transform_3, window_bounds = array<i64: 64, 1>}, {transform_indices = @transform_4, window_bounds = array<i64: 8, 1>}, {pipeline_mode = #tpu.pipeline_mode<synchronous>, transform_indices = @transform_5, window_bounds = array<i64: 32, 32>}, {pipeline_mode = #tpu.pipeline_mode<synchronous>, transform_indices = @transform_6, window_bounds = array<i64: 32, 32>}, {pipeline_mode = #tpu.pipeline_mode<synchronous>, transform_indices = @transform_7, window_bounds = array<i64: 32, 32>}, {transform_indices = @transform_8, window_bounds = array<i64: 8, 32>}]} {
    %c0 = arith.constant 0 : index
    %c0_0 = arith.constant 0 : index
    %0 = vector.load %arg2[%c0, %c0_0] : memref<64x1xf32, #tpu.memory_space<vmem>>, vector<64x1xf32>
    %c0_1 = arith.constant 0 : index
    %c0_2 = arith.constant 0 : index
    %1 = vector.load %arg1[%c0_1, %c0_2] : memref<64x32xf32, #tpu.memory_space<vmem>>, vector<64x32xf32>
    %2 = vector.broadcast %0 : vector<64x1xf32> to vector<64x32xf32>
    %3 = arith.mulf %1, %2 : vector<64x32xf32>
    %c0_3 = arith.constant 0 : index
    %c0_4 = arith.constant 0 : index
    %4 = vector.load %arg7[%c0_3, %c0_4] : memref<32x32xf32, #tpu.memory_space<vmem>>, vector<32x32xf32>
    %cst = arith.constant dense<0.000000e+00> : vector<64x32xf32>
    %5 = tpu.matmul %3, %4, %cst {dimension_numbers = #tpu.dot_dimension_numbers<[1], [0], [0], [1], [0, 0, 1, 1], [], []>} : vector<64x32xf32>, vector<32x32xf32>, vector<64x32xf32> -> vector<64x32xf32>
    %c0_5 = arith.constant 0 : index
    %c0_6 = arith.constant 0 : index
    %6 = vector.load %arg6[%c0_5, %c0_6] : memref<32x32xf32, #tpu.memory_space<vmem>>, vector<32x32xf32>
    %cst_7 = arith.constant dense<0.000000e+00> : vector<64x32xf32>
    %7 = tpu.matmul %3, %6, %cst_7 {dimension_numbers = #tpu.dot_dimension_numbers<[1], [0], [0], [1], [0, 0, 1, 1], [], []>} : vector<64x32xf32>, vector<32x32xf32>, vector<64x32xf32> -> vector<64x32xf32>
    %c1_i32 = arith.constant 1 : i32
    %8 = tpu.dynamic_rotate %7 by %c1_i32 dim 0 : vector<64x32xf32>, i32 -> vector<64x32xf32>
    %c0_8 = arith.constant 0 : index
    %c0_9 = arith.constant 0 : index
    %9 = vector.load %arg3[%c0_8, %c0_9] : memref<64x1xf32, #tpu.memory_space<vmem>>, vector<64x1xf32>
    %10 = vector.broadcast %9 : vector<64x1xf32> to vector<64x32xf32>
    %11 = arith.mulf %8, %10 : vector<64x32xf32>
    %12 = arith.addf %5, %11 : vector<64x32xf32>
    %c0_10 = arith.constant 0 : index
    %c0_11 = arith.constant 0 : index
    %13 = vector.load %arg8[%c0_10, %c0_11] : memref<32x32xf32, #tpu.memory_space<vmem>>, vector<32x32xf32>
    %cst_12 = arith.constant dense<0.000000e+00> : vector<64x32xf32>
    %14 = tpu.matmul %3, %13, %cst_12 {dimension_numbers = #tpu.dot_dimension_numbers<[1], [0], [0], [1], [0, 0, 1, 1], [], []>} : vector<64x32xf32>, vector<32x32xf32>, vector<64x32xf32> -> vector<64x32xf32>
    %c63_i32 = arith.constant 63 : i32
    %15 = tpu.dynamic_rotate %14 by %c63_i32 dim 0 : vector<64x32xf32>, i32 -> vector<64x32xf32>
    %c0_13 = arith.constant 0 : index
    %c0_14 = arith.constant 0 : index
    %16 = vector.load %arg4[%c0_13, %c0_14] : memref<64x1xf32, #tpu.memory_space<vmem>>, vector<64x1xf32>
    %17 = vector.broadcast %16 : vector<64x1xf32> to vector<64x32xf32>
    %18 = arith.mulf %15, %17 : vector<64x32xf32>
    %19 = arith.addf %12, %18 : vector<64x32xf32>
    %cst_15 = arith.constant 0.000000e+00 : f32
    %20 = vector.broadcast %cst_15 : f32 to vector<64x32xf32>
    %21 = arith.maximumf %19, %20 : vector<64x32xf32>
    %22 = vector.broadcast %0 : vector<64x1xf32> to vector<64x32xf32>
    %23 = arith.mulf %21, %22 : vector<64x32xf32>
    %24 = vector.shape_cast %23 : vector<64x32xf32> to vector<8x8x32xf32>
    %cst_16 = arith.constant dense<0.000000e+00> : vector<8x32xf32>
    %25 = vector.multi_reduction <add>, %24, %cst_16 [1] : vector<8x8x32xf32> to vector<8x32xf32>
    %c0_17 = arith.constant 0 : index
    %c0_18 = arith.constant 0 : index
    %26 = vector.load %arg5[%c0_17, %c0_18] : memref<8x1xf32, #tpu.memory_space<vmem>>, vector<8x1xf32>
    %27 = vector.broadcast %26 : vector<8x1xf32> to vector<8x32xf32>
    %28 = arith.mulf %25, %27 : vector<8x32xf32>
    %c0_19 = arith.constant 0 : index
    %c0_20 = arith.constant 0 : index
    %29 = vector.load %arg9[%c0_19, %c0_20] : memref<8x32xf32, #tpu.memory_space<vmem>>, vector<8x32xf32>
    tpu.vector_store %arg9[%c0_19, %c0_20], %28 {strides = array<i32>} : memref<8x32xf32, #tpu.memory_space<vmem>>, vector<8x32xf32>,
    return
  }
  func.func @transform_0(%arg0: i32) -> (i32, i32) {
    %c0_i32 = arith.constant 0 : i32
    %c0_i32_0 = arith.constant 0 : i32
    return %arg0, %c0_i32 : i32, i32
  }
  func.func @transform_1(%arg0: i32) -> (i32, i32) {
    %c0_i32 = arith.constant 0 : i32
    %c0_i32_0 = arith.constant 0 : i32
    return %arg0, %c0_i32 : i32, i32
  }
  func.func @transform_2(%arg0: i32) -> (i32, i32) {
    %c0_i32 = arith.constant 0 : i32
    %c0_i32_0 = arith.constant 0 : i32
    %c0_i32_1 = arith.constant 0 : i32
    return %c0_i32, %c0_i32_0 : i32, i32
  }
  func.func @transform_3(%arg0: i32) -> (i32, i32) {
    %c0_i32 = arith.constant 0 : i32
    %c0_i32_0 = arith.constant 0 : i32
    %c0_i32_1 = arith.constant 0 : i32
    return %c0_i32, %c0_i32_0 : i32, i32
  }
  func.func @transform_4(%arg0: i32) -> (i32, i32) {
    %c0_i32 = arith.constant 0 : i32
    %c0_i32_0 = arith.constant 0 : i32
    return %arg0, %c0_i32 : i32, i32
  }
  func.func @transform_5(%arg0: i32) -> (i32, i32) {
    %c0_i32 = arith.constant 0 : i32
    %c0_i32_0 = arith.constant 0 : i32
    %c0_i32_1 = arith.constant 0 : i32
    return %c0_i32, %c0_i32_0 : i32, i32
  }
  func.func @transform_6(%arg0: i32) -> (i32, i32) {
    %c0_i32 = arith.constant 0 : i32
    %c0_i32_0 = arith.constant 0 : i32
    %c0_i32_1 = arith.constant 0 : i32
    return %c0_i32, %c0_i32_0 : i32, i32
  }
  func.func @transform_7(%arg0: i32) -> (i32, i32) {
    %c0_i32 = arith.constant 0 : i32
    %c0_i32_0 = arith.constant 0 : i32
    %c0_i32_1 = arith.constant 0 : i32
    return %c0_i32, %c0_i32_0 : i32, i32
  }
  func.func @transform_8(%arg0: i32) -> (i32, i32) {
    %c0_i32 = arith.constant 0 : i32
    %c0_i32_0 = arith.constant 0 : i32
    return %arg0, %c0_i32 : i32, i32
  }
}

</mosaic_0001>

<llo_original>
// kernel: tpu_custom_call.1
$region0: #{tpu_custom_call.1}
  #allocation0 [shape = 'u32[]', space=smem, size = 0x4, offset = 0x4, fixed_abs, tag = 'smem constant byte address 0x4 - core index']
  #allocation1 [shape = 'u32[72,128]{1,0:T(1,128)}', space=vmem, size = 0x9000, scoped, tag = 'internal scratch']
  %s0 = inlined_call_operand.vmem [shape: f32[128,32], index: 0, kind: input, shape index: {}]
  %s1 = inlined_call_operand.vmem [shape: f32[128,1], index: 1, kind: input, shape index: {}]
  %s2 = inlined_call_operand.vmem [shape: f32[64,1], index: 2, kind: input, shape index: {}]
  %s3 = inlined_call_operand.vmem [shape: f32[64,1], index: 3, kind: input, shape index: {}]
  %s4 = inlined_call_operand.vmem [shape: f32[16,1], index: 4, kind: input, shape index: {}]
  %s5 = inlined_call_operand.vmem [shape: f32[32,32], index: 5, kind: input, shape index: {}]
  %s6 = inlined_call_operand.vmem [shape: f32[32,32], index: 6, kind: input, shape index: {}]
  %s7 = inlined_call_operand.vmem [shape: f32[32,32], index: 7, kind: input, shape index: {}]
  %s8 = inlined_call_operand.hbm [shape: f32[16,32], index: 8, kind: output, shape index: {}]
  %s9 = sld [smem:[#allocation0]]
  $region65: #{tpu_custom_call.1} parent=0
    _
  %s11 = ssub.s32 1, %s9
  %s12 = scalar_select 0, %s11, %s9
  $region1: #{tpu_custom_call.1} parent=0
    #allocation2 [shape = 'u8[8192]{0}', space=vmem, size = 0x2000, scoped, tag = 'output window, operand 0']
    #allocation3 [shape = 's32[2]{0}', space=sflag, size = 0x8, scoped, tag = 'scoped memory for tpu_custom_call.1']
    %13 = vsyncpa [#allocation3], 0
    %s14 = scalar_lea.sflag [#allocation3], 1
    %15 = vsyncpa %s14, 0
    loop: start=0, step=1, limit=4
    $region2: #{tpu_custom_call.1} parent=1 // loop_pre_header
      _
    $region3: #{tpu_custom_call.1} parent=1 // loop_header
      %s17 = sphi 0, %s21
      %p18 = scmp.ge.s32.totalorder %s17, 4
      %s27 = sphi 0, %s29
      %s30 = sphi 0, %s27
      %s31 = sphi 0, %s30
      %s47 = sphi 0, %s31
      %s53 = sphi 0, %s55
      %s56 = sphi 0, %s53
      %s57 = sphi 0, %s56
      %s73 = sphi 0, %s57
      %s77 = sphi 0, %s77
      %s79 = sphi 0, %s77
      %s80 = sphi 0, %s79
      %s94 = sphi 0, %s80
      %s98 = sphi 0, %s98
      %s100 = sphi 0, %s98
      %s101 = sphi 0, %s100
      %s115 = sphi 0, %s101
      %s121 = sphi 0, %s123
      %s124 = sphi 0, %s121
      %s125 = sphi 0, %s124
      %s141 = sphi 0, %s125
      %s145 = sphi 0, %s145
      %s147 = sphi 0, %s145
      %s148 = sphi 0, %s147
      %s162 = sphi 0, %s148
      %s166 = sphi 0, %s166
      %s168 = sphi 0, %s166
      %s169 = sphi 0, %s168
      %s183 = sphi 0, %s169
      %s187 = sphi 0, %s187
      %s189 = sphi 0, %s187
      %s190 = sphi 0, %s189
      %s204 = sphi 0, %s190
      %s210 = sphi 0, %s212
      %s213 = sphi 0, %s210
      %s214 = sphi 0, %s213
      %s230 = sphi 0, %s214
    $region4: #{tpu_custom_call.1} parent=1 // loop_header_branch
      %20 = sbr.rel (%p18) target = $region8
    $region5: #{tpu_custom_call.1} parent=1 // loop_body
      %s22 = ssub.s32 %s17, 1
      %s23 = ssub.s32 %s17, 2
      %s24 = sadd.s32 %s17, 1
      %s25 = ssub.s32 %s17, %s24
      %p26 = scmp.eq.s32.totalorder %s25, 0
      %s28 = sadd.s32 %s27, 1
      %s29 = scalar_select %p26, %s27, %s28
      %p32 = pneg %p26
      %p33 = scmp.eq.s32.totalorder %s17, 1
      %p34 = por %p32, %p33
      %p35 = scmp.ne.s32.totalorder %s27, %s30
      %p36 = scmp.eq.s32.totalorder %s17, 0
      %p37 = por %p35, %p36
      %p38 = scmp.ne.s32.totalorder %s27, %s30
      %p39 = scmp.eq.s32.totalorder %s22, 1
      %p40 = por %p38, %p39
      %p41 = scmp.ne.s32.totalorder %s30, %s31
      %p42 = scmp.eq.s32.totalorder %s22, 0
      %p43 = por %p41, %p42
      %p44 = scmp.ne.s32.totalorder %s30, %s31
      %p45 = scmp.eq.s32.totalorder %s23, 1
      %p46 = por %p44, %p45
      %p48 = scmp.ne.s32.totalorder %s31, %s47
      %p49 = scmp.eq.s32.totalorder %s23, 0
      %p50 = por %p48, %p49
      %s51 = ssub.s32 %s17, %s24
      %p52 = scmp.eq.s32.totalorder %s51, 0
      %s54 = sadd.s32 %s53, 1
      %s55 = scalar_select %p52, %s53, %s54
      %p58 = pneg %p52
      %p59 = scmp.eq.s32.totalorder %s17, 1
      %p60 = por %p58, %p59
      %p61 = scmp.ne.s32.totalorder %s53, %s56
      %p62 = scmp.eq.s32.totalorder %s17, 0
      %p63 = por %p61, %p62
      %p64 = scmp.ne.s32.totalorder %s53, %s56
      %p65 = scmp.eq.s32.totalorder %s22, 1
      %p66 = por %p64, %p65
      %p67 = scmp.ne.s32.totalorder %s56, %s57
      %p68 = scmp.eq.s32.totalorder %s22, 0
      %p69 = por %p67, %p68
      %p70 = scmp.ne.s32.totalorder %s56, %s57
      %p71 = scmp.eq.s32.totalorder %s23, 1
      %p72 = por %p70, %p71
      %p74 = scmp.ne.s32.totalorder %s57, %s73
      %p75 = scmp.eq.s32.totalorder %s23, 0
      %p76 = por %p74, %p75
      %s78 = sadd.s32 %s77, 1
      %p81 = scmp.eq.s32.totalorder %s17, 1
      %p82 = scmp.ne.s32.totalorder %s77, %s79
      %p83 = scmp.eq.s32.totalorder %s17, 0
      %p84 = por %p82, %p83
      %p85 = scmp.ne.s32.totalorder %s77, %s79
      %p86 = scmp.eq.s32.totalorder %s22, 1
      %p87 = por %p85, %p86
      %p88 = scmp.ne.s32.totalorder %s79, %s80
      %p89 = scmp.eq.s32.totalorder %s22, 0
      %p90 = por %p88, %p89
      %p91 = scmp.ne.s32.totalorder %s79, %s80
      %p92 = scmp.eq.s32.totalorder %s23, 1
      %p93 = por %p91, %p92
      %p95 = scmp.ne.s32.totalorder %s80, %s94
      %p96 = scmp.eq.s32.totalorder %s23, 0
      %p97 = por %p95, %p96
      %s99 = sadd.s32 %s98, 1
      %p102 = scmp.eq.s32.totalorder %s17, 1
      %p103 = scmp.ne.s32.totalorder %s98, %s100
      %p104 = scmp.eq.s32.totalorder %s17, 0
      %p105 = por %p103, %p104
      %p106 = scmp.ne.s32.totalorder %s98, %s100
      %p107 = scmp.eq.s32.totalorder %s22, 1
      %p108 = por %p106, %p107
      %p109 = scmp.ne.s32.totalorder %s100, %s101
      %p110 = scmp.eq.s32.totalorder %s22, 0
      %p111 = por %p109, %p110
      %p112 = scmp.ne.s32.totalorder %s100, %s101
      %p113 = scmp.eq.s32.totalorder %s23, 1
      %p114 = por %p112, %p113
      %p116 = scmp.ne.s32.totalorder %s101, %s115
      %p117 = scmp.eq.s32.totalorder %s23, 0
      %p118 = por %p116, %p117
      %s119 = ssub.s32 %s17, %s24
      %p120 = scmp.eq.s32.totalorder %s119, 0
      %s122 = sadd.s32 %s121, 1
      %s123 = scalar_select %p120, %s121, %s122
      %p126 = pneg %p120
      %p127 = scmp.eq.s32.totalorder %s17, 1
      %p128 = por %p126, %p127
      %p129 = scmp.ne.s32.totalorder %s121, %s124
      %p130 = scmp.eq.s32.totalorder %s17, 0
      %p131 = por %p129, %p130
      %p132 = scmp.ne.s32.totalorder %s121, %s124
      %p133 = scmp.eq.s32.totalorder %s22, 1
      %p134 = por %p132, %p133
      %p135 = scmp.ne.s32.totalorder %s124, %s125
      %p136 = scmp.eq.s32.totalorder %s22, 0
      %p137 = por %p135, %p136
      %p138 = scmp.ne.s32.totalorder %s124, %s125
      %p139 = scmp.eq.s32.totalorder %s23, 1
      %p140 = por %p138, %p139
      %p142 = scmp.ne.s32.totalorder %s125, %s141
      %p143 = scmp.eq.s32.totalorder %s23, 0
      %p144 = por %p142, %p143
      %s146 = sadd.s32 %s145, 1
      %p149 = scmp.eq.s32.totalorder %s17, 1
      %p150 = scmp.ne.s32.totalorder %s145, %s147
      %p151 = scmp.eq.s32.totalorder %s17, 0
      %p152 = por %p150, %p151
      %p153 = scmp.ne.s32.totalorder %s145, %s147
      %p154 = scmp.eq.s32.totalorder %s22, 1
      %p155 = por %p153, %p154
      %p156 = scmp.ne.s32.totalorder %s147, %s148
      %p157 = scmp.eq.s32.totalorder %s22, 0
      %p158 = por %p156, %p157
      %p159 = scmp.ne.s32.totalorder %s147, %s148
      %p160 = scmp.eq.s32.totalorder %s23, 1
      %p161 = por %p159, %p160
      %p163 = scmp.ne.s32.totalorder %s148, %s162
      %p164 = scmp.eq.s32.totalorder %s23, 0
      %p165 = por %p163, %p164
      %s167 = sadd.s32 %s166, 1
      %p170 = scmp.eq.s32.totalorder %s17, 1
      %p171 = scmp.ne.s32.totalorder %s166, %s168
      %p172 = scmp.eq.s32.totalorder %s17, 0
      %p173 = por %p171, %p172
      %p174 = scmp.ne.s32.totalorder %s166, %s168
      %p175 = scmp.eq.s32.totalorder %s22, 1
      %p176 = por %p174, %p175
      %p177 = scmp.ne.s32.totalorder %s168, %s169
      %p178 = scmp.eq.s32.totalorder %s22, 0
      %p179 = por %p177, %p178
      %p180 = scmp.ne.s32.totalorder %s168, %s169
      %p181 = scmp.eq.s32.totalorder %s23, 1
      %p182 = por %p180, %p181
      %p184 = scmp.ne.s32.totalorder %s169, %s183
      %p185 = scmp.eq.s32.totalorder %s23, 0
      %p186 = por %p184, %p185
      %s188 = sadd.s32 %s187, 1
      %p191 = scmp.eq.s32.totalorder %s17, 1
      %p192 = scmp.ne.s32.totalorder %s187, %s189
      %p193 = scmp.eq.s32.totalorder %s17, 0
      %p194 = por %p192, %p193
      %p195 = scmp.ne.s32.totalorder %s187, %s189
      %p196 = scmp.eq.s32.totalorder %s22, 1
      %p197 = por %p195, %p196
      %p198 = scmp.ne.s32.totalorder %s189, %s190
      %p199 = scmp.eq.s32.totalorder %s22, 0
      %p200 = por %p198, %p199
      %p201 = scmp.ne.s32.totalorder %s189, %s190
      %p202 = scmp.eq.s32.totalorder %s23, 1
      %p203 = por %p201, %p202
      %p205 = scmp.ne.s32.totalorder %s190, %s204
      %p206 = scmp.eq.s32.totalorder %s23, 0
      %p207 = por %p205, %p206
      %s208 = ssub.s32 %s17, %s24
      %p209 = scmp.eq.s32.totalorder %s208, 0
      %s211 = sadd.s32 %s210, 1
      %s212 = scalar_select %p209, %s210, %s211
      %p215 = pneg %p209
      %p216 = scmp.eq.s32.totalorder %s17, 1
      %p217 = por %p215, %p216
      %p218 = scmp.ne.s32.totalorder %s210, %s213
      %p219 = scmp.eq.s32.totalorder %s17, 0
      %p220 = por %p218, %p219
      %p221 = scmp.ne.s32.totalorder %s210, %s213
      %p222 = scmp.eq.s32.totalorder %s22, 1
      %p223 = por %p221, %p222
      %p224 = scmp.ne.s32.totalorder %s213, %s214
      %p225 = scmp.eq.s32.totalorder %s22, 0
      %p226 = por %p224, %p225
      %p227 = scmp.ne.s32.totalorder %s213, %s214
      %p228 = scmp.eq.s32.totalorder %s23, 1
      %p229 = por %p227, %p228
      %p231 = scmp.ne.s32.totalorder %s214, %s230
      %p232 = scmp.eq.s32.totalorder %s23, 0
      %p233 = por %p231, %p232
      %p234 = scmp.le.s32.totalorder 1, %s17
      %p235 = scmp.lt.s32.totalorder %s17, 3
      %p236 = pnand %p234, %p235
      %p237 = pneg %p236
      // Predicated region
      $region9: #{tpu_custom_call.1} parent=5 // pred_check
        _
      $region10: #{tpu_custom_call.1} parent=5 // pred_check_branch
        %239 = sbr.rel (%p236) target = $region12
      $region11: #{tpu_custom_call.1} parent=5 // pred_region
        %s240 = ssub.s32 %s17, 1
        // Predicated region
        $region13: #{tpu_custom_call.1} parent=11 // pred_check
          %p241 = pneg %p90
        $region14: #{tpu_custom_call.1} parent=11 // pred_check_branch
          %243 = sbr.rel (%p241) target = $region16
        $region15: #{tpu_custom_call.1} parent=11 // pred_region
          _
        $region16: #{tpu_custom_call.1} parent=11 // pred_fallthru
          _
        // Predicated region
        $region17: #{tpu_custom_call.1} parent=11 // pred_check
          %p244 = pneg %p111
        $region18: #{tpu_custom_call.1} parent=11 // pred_check_branch
          %246 = sbr.rel (%p244) target = $region20
        $region19: #{tpu_custom_call.1} parent=11 // pred_region
          _
        $region20: #{tpu_custom_call.1} parent=11 // pred_fallthru
          _
        // Predicated region
        $region21: #{tpu_custom_call.1} parent=11 // pred_check
          %p247 = pneg %p158
        $region22: #{tpu_custom_call.1} parent=11 // pred_check_branch
          %249 = sbr.rel (%p247) target = $region24
        $region23: #{tpu_custom_call.1} parent=11 // pred_region
          _
        $region24: #{tpu_custom_call.1} parent=11 // pred_fallthru
          _
        // Predicated region
        $region25: #{tpu_custom_call.1} parent=11 // pred_check
          %p250 = pneg %p179
        $region26: #{tpu_custom_call.1} parent=11 // pred_check_branch
          %252 = sbr.rel (%p250) target = $region28
        $region27: #{tpu_custom_call.1} parent=11 // pred_region
          _
        $region28: #{tpu_custom_call.1} parent=11 // pred_fallthru
          _
        // Predicated region
        $region29: #{tpu_custom_call.1} parent=11 // pred_check
          %p253 = pneg %p200
        $region30: #{tpu_custom_call.1} parent=11 // pred_check_branch
          %255 = sbr.rel (%p253) target = $region32
        $region31: #{tpu_custom_call.1} parent=11 // pred_region
          _
        $region32: #{tpu_custom_call.1} parent=11 // pred_fallthru
          _
      $region12: #{tpu_custom_call.1} parent=5 // pred_fallthru
        _
      %p256 = scmp.lt.s32.totalorder %s17, 2
      // Predicated region
      $region33: #{tpu_custom_call.1} parent=5 // pred_check
        %p257 = pneg %p256
      $region34: #{tpu_custom_call.1} parent=5 // pred_check_branch
        %259 = sbr.rel (%p257) target = $region36
      $region35: #{tpu_custom_call.1} parent=5 // pred_region
        // Predicated region
        $region37: #{tpu_custom_call.1} parent=35 // pred_check
          %p260 = pneg %p37
        $region38: #{tpu_custom_call.1} parent=35 // pred_check_branch
          %262 = sbr.rel (%p260) target = $region40
        $region39: #{tpu_custom_call.1} parent=35 // pred_region
          %s263 = smul.u32 8, %s17
          %p264 = scmp.lt.s32.totalorder %s263, 15
          %s265 = scalar_select %p264, %s263, 15
          %s266 = smul.addr %s265, 8
          %s267 = scalar_lea.vmem %s0, %s266
          %s268 = smul.u32 8, %s17
        $region40: #{tpu_custom_call.1} parent=35 // pred_fallthru
          _
        // Predicated region
        $region41: #{tpu_custom_call.1} parent=35 // pred_check
          %p269 = pneg %p63
        $region42: #{tpu_custom_call.1} parent=35 // pred_check_branch
          %271 = sbr.rel (%p269) target = $region44
        $region43: #{tpu_custom_call.1} parent=35 // pred_region
          %s272 = smul.u32 8, %s17
          %p273 = scmp.lt.s32.totalorder %s272, 15
          %s274 = scalar_select %p273, %s272, 15
          %s275 = smul.addr %s274, 8
          %s276 = scalar_lea.vmem %s1, %s275
          %s277 = smul.u32 8, %s17
        $region44: #{tpu_custom_call.1} parent=35 // pred_fallthru
          _
        // Predicated region
        $region45: #{tpu_custom_call.1} parent=35 // pred_check
          %p278 = pneg %p131
        $region46: #{tpu_custom_call.1} parent=35 // pred_check_branch
          %280 = sbr.rel (%p278) target = $region48
        $region47: #{tpu_custom_call.1} parent=35 // pred_region
          %p281 = scmp.lt.s32.totalorder %s17, 1
          %s282 = scalar_select %p281, %s17, 1
          %s283 = smul.addr %s282, 8
          %s284 = scalar_lea.vmem %s4, %s283
        $region48: #{tpu_custom_call.1} parent=35 // pred_fallthru
          _
      $region36: #{tpu_custom_call.1} parent=5 // pred_fallthru
        _
      %p285 = scmp.le.s32.totalorder 1, %s17
      %p286 = scmp.lt.s32.totalorder %s17, 3
      %p287 = pnand %p285, %p286
      %p288 = pneg %p287
      // Predicated region
      $region49: #{tpu_custom_call.1} parent=5 // pred_check
        _
      $region50: #{tpu_custom_call.1} parent=5 // pred_check_branch
        %290 = sbr.rel (%p287) target = $region52
      $region51: #{tpu_custom_call.1} parent=5 // pred_region
        %s291 = ssub.s32 %s17, 1
        %s292 = smul.u32 8, %s22
        %p293 = scmp.lt.s32.totalorder %s292, 15
        %s294 = scalar_select %p293, %s292, 15
        %s295 = smul.addr %s294, 8
        %s296 = scalar_lea.vmem %s0, %s295
        %p297 = pneg %p43
        %p298 = pneg %p40
        %s299 = smul.u32 8, %s22
        %p300 = scmp.lt.s32.totalorder %s299, 15
        %s301 = scalar_select %p300, %s299, 15
        %s302 = smul.addr %s301, 8
        %s303 = scalar_lea.vmem %s1, %s302
        %p304 = pneg %p69
        %p305 = pneg %p66
        %p306 = pneg %p90
        %p307 = pneg %p87
        %p308 = pneg %p111
        %p309 = pneg %p108
        %p310 = scmp.lt.s32.totalorder %s22, 1
        %s311 = scalar_select %p310, %s22, 1
        %s312 = smul.addr %s311, 8
        %s313 = scalar_lea.vmem %s4, %s312
        %p314 = pneg %p137
        %p315 = pneg %p134
        %p316 = pneg %p158
        %p317 = pneg %p155
        %p318 = pneg %p179
        %p319 = pneg %p176
        %p320 = pneg %p200
        %p321 = pneg %p197
        %p322 = pneg %p226
        %p323 = pneg %p223
        %s324 = sand.u32 %s213, 1
        %s325 = scalar_lea.sflag [#allocation3], %s324
        %s326 = sand.u32 %s213, 1
        %s327 = smul.addr %s326, 8
        %s328 = scalar_lea.vmem [#allocation2], %s327
        %s329 = smul.u32 8, %s22
        %p330 = scmp.lt.s32.totalorder %s329, 15
        %s331 = scalar_select %p330, %s329, 15
        %s332 = smul.addr %s331, 8
        %s333 = scalar_lea.vmem %s0, %s332
        %s334 = smul.u32 8, %s22
        %s335 = smul.u32 8, %s22
        %p336 = scmp.lt.s32.totalorder %s335, 15
        %s337 = scalar_select %p336, %s335, 15
        %s338 = smul.addr %s337, 8
        %s339 = scalar_lea.vmem %s1, %s338
        %s340 = smul.u32 8, %s22
        %p341 = scmp.lt.s32.totalorder %s22, 1
        %s342 = scalar_select %p341, %s22, 1
        %s343 = smul.addr %s342, 8
        %s344 = scalar_lea.vmem %s4, %s343
        %v345 = vld [vmem:[%s339] sm:$0xff]
        %v346 = vld [vmem:[%s339 + $0x8] sm:$0xff]
        %v347 = vld [vmem:[%s339 + $0x10] sm:$0xff]
        %v348 = vld [vmem:[%s339 + $0x18] sm:$0xff]
        %v349 = vld [vmem:[%s339 + $0x20] sm:$0xff]
        %v350 = vld [vmem:[%s339 + $0x28] sm:$0xff]
        %v351 = vld [vmem:[%s339 + $0x30] sm:$0xff]
        %v352 = vld [vmem:[%s339 + $0x38] sm:$0xff]
        %v353 = vld [vmem:[%s333] sm:$0xff]
        %v354 = vld [vmem:[%s333 + $0x8] sm:$0xff]
        %v355 = vld [vmem:[%s333 + $0x10] sm:$0xff]
        %v356 = vld [vmem:[%s333 + $0x18] sm:$0xff]
        %v357 = vld [vmem:[%s333 + $0x20] sm:$0xff]
        %v358 = vld [vmem:[%s333 + $0x28] sm:$0xff]
        %v359 = vld [vmem:[%s333 + $0x30] sm:$0xff]
        %v360 = vld [vmem:[%s333 + $0x38] sm:$0xff]
        %362 = vset.pattern.permute.xlu0 0
        %363 = vperm.xlu0 %362, %v345
        %v364 = vpop.permute.xlu0 %363
        %367 = vset.pattern.permute.xlu0 0
        %368 = vperm.xlu0 %367, %v346
        %v369 = vpop.permute.xlu0 %368
        %372 = vset.pattern.permute.xlu0 0
        %373 = vperm.xlu0 %372, %v347
        %v374 = vpop.permute.xlu0 %373
        %377 = vset.pattern.permute.xlu0 0
        %378 = vperm.xlu0 %377, %v348
        %v379 = vpop.permute.xlu0 %378
        %382 = vset.pattern.permute.xlu0 0
        %383 = vperm.xlu0 %382, %v349
        %v384 = vpop.permute.xlu0 %383
        %387 = vset.pattern.permute.xlu0 0
        %388 = vperm.xlu0 %387, %v350
        %v389 = vpop.permute.xlu0 %388
        %392 = vset.pattern.permute.xlu0 0
        %393 = vperm.xlu0 %392, %v351
        %v394 = vpop.permute.xlu0 %393
        %397 = vset.pattern.permute.xlu0 0
        %398 = vperm.xlu0 %397, %v352
        %v399 = vpop.permute.xlu0 %398
        %v401 = vmul.f32 %v353, %v364
        %v402 = vmul.f32 %v354, %v369
        %v403 = vmul.f32 %v355, %v374
        %v404 = vmul.f32 %v356, %v379
        %v405 = vmul.f32 %v357, %v384
        %v406 = vmul.f32 %v358, %v389
        %v407 = vmul.f32 %v359, %v394
        %v408 = vmul.f32 %v360, %v399
        %v409 = vld [vmem:[%s6] sm:$0xff]
        %v410 = vld [vmem:[%s6 + $0x8] sm:$0xff]
        %v411 = vld [vmem:[%s6 + $0x10] sm:$0xff]
        %v412 = vld [vmem:[%s6 + $0x18] sm:$0xff]
        %v413 = vld [vmem:[%s5] sm:$0xff]
        %v414 = vld [vmem:[%s5 + $0x8] sm:$0xff]
        %v415 = vld [vmem:[%s5 + $0x10] sm:$0xff]
        %v416 = vld [vmem:[%s5 + $0x18] sm:$0xff]
        %vm417 = vcmask 261120
        %v419 = vsel %vm417, %v401, 0
        %v422 = vsel %vm417, %v402, 0
        %v425 = vsel %vm417, %v403, 0
        %v428 = vsel %vm417, %v404, 0
        %v431 = vsel %vm417, %v405, 0
        %v434 = vsel %vm417, %v406, 0
        %v437 = vsel %vm417, %v407, 0
        %v440 = vsel %vm417, %v408, 0
        %442 = vmatpush.msra.mxu0 0.0
        %443 = vmatpush.msra.mxu0 0.0
        %444 = vmatpush.msra.mxu0 0.0
        %445 = vmatpush.msra.mxu0 0.0
        %446 = vmatpush.msra.mxu0 0.0
        %447 = vmatpush.msra.mxu0 0.0
        %448 = vmatpush.msra.mxu0 0.0
        %449 = vmatpush.msra.mxu0 0.0
        %450 = vmatpush.msra.mxu0 0.0
        %451 = vmatpush.msra.mxu0 0.0
        %452 = vmatpush.msra.mxu0 0.0
        %453 = vmatpush.msra.mxu0 0.0
        %454 = vmatpush.msra.mxu0 %v416
        %455 = vmatpush.msra.mxu0 %v415
        %456 = vmatpush.msra.mxu0 %v414
        %457 = vmatpush.msra.mxu0 %v413
        %458 = vmatmul.f32.gmra.mxu0 %v419
        %v459 = vpop.f32.mrf.mxu0
        %v460 = vadd.f32 0.0, %v459
        %461 = vmatmul.f32.gmra.mxu0 %v422
        %v462 = vpop.f32.mrf.mxu0
        %v463 = vadd.f32 0.0, %v462
        %464 = vmatmul.f32.gmra.mxu0 %v425
        %v465 = vpop.f32.mrf.mxu0
        %v466 = vadd.f32 0.0, %v465
        %467 = vmatmul.f32.gmra.mxu0 %v428
        %v468 = vpop.f32.mrf.mxu0
        %v469 = vadd.f32 0.0, %v468
        %470 = vmatmul.f32.gmra.mxu0 %v431
        %v471 = vpop.f32.mrf.mxu0
        %v472 = vadd.f32 0.0, %v471
        %473 = vmatmul.f32.gmra.mxu0 %v434
        %v474 = vpop.f32.mrf.mxu0
        %v475 = vadd.f32 0.0, %v474
        %476 = vmatmul.f32.gmra.mxu0 %v437
        %v477 = vpop.f32.mrf.mxu0
        %v478 = vadd.f32 0.0, %v477
        %479 = vmatmul.f32.gmra.mxu0 %v440
        %v480 = vpop.f32.mrf.mxu0
        %v481 = vadd.f32 0.0, %v480
        %482 = vdwg.mxu0
        %v483 = vrot.slane %v460, 7
        %v484 = vrot.slane %v463, 7
        %v485 = vrot.slane %v466, 7
        %v486 = vrot.slane %v469, 7
        %v487 = vrot.slane %v472, 7
        %v488 = vrot.slane %v475, 7
        %v489 = vrot.slane %v478, 7
        %v490 = vrot.slane %v481, 7
        %v491 = vlaneseq
        %v492 = vshrl.u32 %v491, 7
        %vm493 = vcmp.lt.s32.totalorder %v492, 1
        %v494 = vsel %vm493, %v489, %v490
        %v495 = vsel %vm493, %v488, %v489
        %v496 = vsel %vm493, %v487, %v488
        %v497 = vsel %vm493, %v486, %v487
        %v498 = vsel %vm493, %v485, %v486
        %v499 = vsel %vm493, %v484, %v485
        %v500 = vsel %vm493, %v483, %v484
        %v501 = vsel %vm493, %v490, %v483
        %v502 = vld [vmem:[%s2] sm:$0xff]
        %v503 = vld [vmem:[%s2 + $0x8] sm:$0xff]
        %v504 = vld [vmem:[%s2 + $0x10] sm:$0xff]
        %v505 = vld [vmem:[%s2 + $0x18] sm:$0xff]
        %v506 = vld [vmem:[%s2 + $0x20] sm:$0xff]
        %v507 = vld [vmem:[%s2 + $0x28] sm:$0xff]
        %v508 = vld [vmem:[%s2 + $0x30] sm:$0xff]
        %v509 = vld [vmem:[%s2 + $0x38] sm:$0xff]
        %511 = vset.pattern.permute.xlu0 0
        %512 = vperm.xlu0 %511, %v502
        %v513 = vpop.permute.xlu0 %512
        %516 = vset.pattern.permute.xlu0 0
        %517 = vperm.xlu0 %516, %v503
        %v518 = vpop.permute.xlu0 %517
        %521 = vset.pattern.permute.xlu0 0
        %522 = vperm.xlu0 %521, %v504
        %v523 = vpop.permute.xlu0 %522
        %526 = vset.pattern.permute.xlu0 0
        %527 = vperm.xlu0 %526, %v505
        %v528 = vpop.permute.xlu0 %527
        %531 = vset.pattern.permute.xlu0 0
        %532 = vperm.xlu0 %531, %v506
        %v533 = vpop.permute.xlu0 %532
        %536 = vset.pattern.permute.xlu0 0
        %537 = vperm.xlu0 %536, %v507
        %v538 = vpop.permute.xlu0 %537
        %541 = vset.pattern.permute.xlu0 0
        %542 = vperm.xlu0 %541, %v508
        %v543 = vpop.permute.xlu0 %542
        %546 = vset.pattern.permute.xlu0 0
        %547 = vperm.xlu0 %546, %v509
        %v548 = vpop.permute.xlu0 %547
        %v550 = vmul.f32 %v501, %v513
        %v551 = vmul.f32 %v500, %v518
        %v552 = vmul.f32 %v499, %v523
        %v553 = vmul.f32 %v498, %v528
        %v554 = vmul.f32 %v497, %v533
        %v555 = vmul.f32 %v496, %v538
        %v556 = vmul.f32 %v495, %v543
        %v557 = vmul.f32 %v494, %v548
        %558 = vmatpush.msra.mxu0 0.0
        %559 = vmatpush.msra.mxu0 0.0
        %560 = vmatpush.msra.mxu0 0.0
        %561 = vmatpush.msra.mxu0 0.0
        %562 = vmatpush.msra.mxu0 0.0
        %563 = vmatpush.msra.mxu0 0.0
        %564 = vmatpush.msra.mxu0 0.0
        %565 = vmatpush.msra.mxu0 0.0
        %566 = vmatpush.msra.mxu0 0.0
        %567 = vmatpush.msra.mxu0 0.0
        %568 = vmatpush.msra.mxu0 0.0
        %569 = vmatpush.msra.mxu0 0.0
        %570 = vmatpush.msra.mxu0 %v412
        %571 = vmatpush.msra.mxu0 %v411
        %572 = vmatpush.msra.mxu0 %v410
        %573 = vmatpush.msra.mxu0 %v409
        %574 = vmatmul.f32.gmra.mxu0 %v419
        %v575 = vpop.f32.mrf.mxu0
        %v576 = vadd.f32 %v550, %v575
        %577 = vmatmul.f32.gmra.mxu0 %v422
        %v578 = vpop.f32.mrf.mxu0
        %v579 = vadd.f32 %v551, %v578
        %580 = vmatmul.f32.gmra.mxu0 %v425
        %v581 = vpop.f32.mrf.mxu0
        %v582 = vadd.f32 %v552, %v581
        %583 = vmatmul.f32.gmra.mxu0 %v428
        %v584 = vpop.f32.mrf.mxu0
        %v585 = vadd.f32 %v553, %v584
        %586 = vmatmul.f32.gmra.mxu0 %v431
        %v587 = vpop.f32.mrf.mxu0
        %v588 = vadd.f32 %v554, %v587
        %589 = vmatmul.f32.gmra.mxu0 %v434
        %v590 = vpop.f32.mrf.mxu0
        %v591 = vadd.f32 %v555, %v590
        %592 = vmatmul.f32.gmra.mxu0 %v437
        %v593 = vpop.f32.mrf.mxu0
        %v594 = vadd.f32 %v556, %v593
        %595 = vmatmul.f32.gmra.mxu0 %v440
        %v596 = vpop.f32.mrf.mxu0
        %v597 = vadd.f32 %v557, %v596
        %598 = vdwg.mxu0
        %v599 = vld [vmem:[%s7] sm:$0xff]
        %v600 = vld [vmem:[%s7 + $0x8] sm:$0xff]
        %v601 = vld [vmem:[%s7 + $0x10] sm:$0xff]
        %v602 = vld [vmem:[%s7 + $0x18] sm:$0xff]
        %603 = vmatpush.msra.mxu0 0.0
        %604 = vmatpush.msra.mxu0 0.0
        %605 = vmatpush.msra.mxu0 0.0
        %606 = vmatpush.msra.mxu0 0.0
        %607 = vmatpush.msra.mxu0 0.0
        %608 = vmatpush.msra.mxu0 0.0
        %609 = vmatpush.msra.mxu0 0.0
        %610 = vmatpush.msra.mxu0 0.0
        %611 = vmatpush.msra.mxu0 0.0
        %612 = vmatpush.msra.mxu0 0.0
        %613 = vmatpush.msra.mxu0 0.0
        %614 = vmatpush.msra.mxu0 0.0
        %615 = vmatpush.msra.mxu0 %v602
        %616 = vmatpush.msra.mxu0 %v601
        %617 = vmatpush.msra.mxu0 %v600
        %618 = vmatpush.msra.mxu0 %v599
        %619 = vmatmul.f32.gmra.mxu0 %v419
        %v620 = vpop.f32.mrf.mxu0
        %v621 = vadd.f32 0.0, %v620
        %622 = vmatmul.f32.gmra.mxu0 %v422
        %v623 = vpop.f32.mrf.mxu0
        %v624 = vadd.f32 0.0, %v623
        %625 = vmatmul.f32.gmra.mxu0 %v425
        %v626 = vpop.f32.mrf.mxu0
        %v627 = vadd.f32 0.0, %v626
        %628 = vmatmul.f32.gmra.mxu0 %v428
        %v629 = vpop.f32.mrf.mxu0
        %v630 = vadd.f32 0.0, %v629
        %631 = vmatmul.f32.gmra.mxu0 %v431
        %v632 = vpop.f32.mrf.mxu0
        %v633 = vadd.f32 0.0, %v632
        %634 = vmatmul.f32.gmra.mxu0 %v434
        %v635 = vpop.f32.mrf.mxu0
        %v636 = vadd.f32 0.0, %v635
        %637 = vmatmul.f32.gmra.mxu0 %v437
        %v638 = vpop.f32.mrf.mxu0
        %v639 = vadd.f32 0.0, %v638
        %640 = vmatmul.f32.gmra.mxu0 %v440
        %v641 = vpop.f32.mrf.mxu0
        %v642 = vadd.f32 0.0, %v641
        %643 = vdwg.mxu0
        %v644 = vrot.slane %v621, 1
        %v645 = vrot.slane %v624, 1
        %v646 = vrot.slane %v627, 1
        %v647 = vrot.slane %v630, 1
        %v648 = vrot.slane %v633, 1
        %v649 = vrot.slane %v636, 1
        %v650 = vrot.slane %v639, 1
        %v651 = vrot.slane %v642, 1
        %vm652 = vcmp.lt.s32.totalorder %v492, 7
        %v653 = vsel %vm652, %v650, %v651
        %v654 = vsel %vm652, %v649, %v650
        %v655 = vsel %vm652, %v648, %v649
        %v656 = vsel %vm652, %v647, %v648
        %v657 = vsel %vm652, %v646, %v647
        %v658 = vsel %vm652, %v645, %v646
        %v659 = vsel %vm652, %v644, %v645
        %v660 = vsel %vm652, %v651, %v644
        %v661 = vld [vmem:[%s3] sm:$0xff]
        %v662 = vld [vmem:[%s3 + $0x8] sm:$0xff]
        %v663 = vld [vmem:[%s3 + $0x10] sm:$0xff]
        %v664 = vld [vmem:[%s3 + $0x18] sm:$0xff]
        %v665 = vld [vmem:[%s3 + $0x20] sm:$0xff]
        %v666 = vld [vmem:[%s3 + $0x28] sm:$0xff]
        %v667 = vld [vmem:[%s3 + $0x30] sm:$0xff]
        %v668 = vld [vmem:[%s3 + $0x38] sm:$0xff]
        %670 = vset.pattern.permute.xlu0 0
        %671 = vperm.xlu0 %670, %v661
        %v672 = vpop.permute.xlu0 %671
        %675 = vset.pattern.permute.xlu0 0
        %676 = vperm.xlu0 %675, %v662
        %v677 = vpop.permute.xlu0 %676
        %680 = vset.pattern.permute.xlu0 0
        %681 = vperm.xlu0 %680, %v663
        %v682 = vpop.permute.xlu0 %681
        %685 = vset.pattern.permute.xlu0 0
        %686 = vperm.xlu0 %685, %v664
        %v687 = vpop.permute.xlu0 %686
        %690 = vset.pattern.permute.xlu0 0
        %691 = vperm.xlu0 %690, %v665
        %v692 = vpop.permute.xlu0 %691
        %695 = vset.pattern.permute.xlu0 0
        %696 = vperm.xlu0 %695, %v666
        %v697 = vpop.permute.xlu0 %696
        %700 = vset.pattern.permute.xlu0 0
        %701 = vperm.xlu0 %700, %v667
        %v702 = vpop.permute.xlu0 %701
        %705 = vset.pattern.permute.xlu0 0
        %706 = vperm.xlu0 %705, %v668
        %v707 = vpop.permute.xlu0 %706
        %v709 = vmul.f32 %v659, %v672
        %v710 = vmul.f32 %v658, %v677
        %v711 = vmul.f32 %v657, %v682
        %v712 = vmul.f32 %v656, %v687
        %v713 = vmul.f32 %v655, %v692
        %v714 = vmul.f32 %v654, %v697
        %v715 = vmul.f32 %v653, %v702
        %v716 = vmul.f32 %v660, %v707
        %v717 = vadd.f32 %v576, %v709
        %v718 = vadd.f32 %v579, %v710
        %v719 = vadd.f32 %v582, %v711
        %v720 = vadd.f32 %v585, %v712
        %v721 = vadd.f32 %v588, %v713
        %v722 = vadd.f32 %v591, %v714
        %v723 = vadd.f32 %v594, %v715
        %v724 = vadd.f32 %v597, %v716
        %v725 = vmax.f32 %v717, 0.0
        %v726 = vmax.f32 %v718, 0.0
        %v727 = vmax.f32 %v719, 0.0
        %v728 = vmax.f32 %v720, 0.0
        %v729 = vmax.f32 %v721, 0.0
        %v730 = vmax.f32 %v722, 0.0
        %v731 = vmax.f32 %v723, 0.0
        %v732 = vmax.f32 %v724, 0.0
        %v733 = vmul.f32 %v725, %v364
        %v734 = vmul.f32 %v726, %v369
        %v735 = vmul.f32 %v727, %v374
        %v736 = vmul.f32 %v728, %v379
        %v737 = vmul.f32 %v729, %v384
        %v738 = vmul.f32 %v730, %v389
        %v739 = vmul.f32 %v731, %v394
        %v740 = vmul.f32 %v732, %v399
        %v741 = vsel %vm417, %v733, 0.0
        %v742 = vrot.slane %v741, 4
        %v743 = vadd.f32 %v741, %v742
        %v744 = vrot.slane %v743, 2
        %v745 = vadd.f32 %v743, %v744
        %v746 = vrot.slane %v745, 1
        %v747 = vadd.f32 %v745, %v746
        %v748 = vsel %vm417, %v734, 0.0
        %v749 = vrot.slane %v748, 4
        %v750 = vadd.f32 %v748, %v749
        %v751 = vrot.slane %v750, 2
        %v752 = vadd.f32 %v750, %v751
        %v753 = vrot.slane %v752, 1
        %v754 = vadd.f32 %v752, %v753
        %v755 = vsel %vm417, %v735, 0.0
        %v756 = vrot.slane %v755, 4
        %v757 = vadd.f32 %v755, %v756
        %v758 = vrot.slane %v757, 2
        %v759 = vadd.f32 %v757, %v758
        %v760 = vrot.slane %v759, 1
        %v761 = vadd.f32 %v759, %v760
        %v762 = vsel %vm417, %v736, 0.0
        %v763 = vrot.slane %v762, 4
        %v764 = vadd.f32 %v762, %v763
        %v765 = vrot.slane %v764, 2
        %v766 = vadd.f32 %v764, %v765
        %v767 = vrot.slane %v766, 1
        %v768 = vadd.f32 %v766, %v767
        %v769 = vsel %vm417, %v737, 0.0
        %v770 = vrot.slane %v769, 4
        %v771 = vadd.f32 %v769, %v770
        %v772 = vrot.slane %v771, 2
        %v773 = vadd.f32 %v771, %v772
        %v774 = vrot.slane %v773, 1
        %v775 = vadd.f32 %v773, %v774
        %v776 = vsel %vm417, %v738, 0.0
        %v777 = vrot.slane %v776, 4
        %v778 = vadd.f32 %v776, %v777
        %v779 = vrot.slane %v778, 2
        %v780 = vadd.f32 %v778, %v779
        %v781 = vrot.slane %v780, 1
        %v782 = vadd.f32 %v780, %v781
        %v783 = vsel %vm417, %v739, 0.0
        %v784 = vrot.slane %v783, 4
        %v785 = vadd.f32 %v783, %v784
        %v786 = vrot.slane %v785, 2
        %v787 = vadd.f32 %v785, %v786
        %v788 = vrot.slane %v787, 1
        %v789 = vadd.f32 %v787, %v788
        %v790 = vsel %vm417, %v740, 0.0
        %v791 = vrot.slane %v790, 4
        %v792 = vadd.f32 %v790, %v791
        %v793 = vrot.slane %v792, 2
        %v794 = vadd.f32 %v792, %v793
        %v795 = vrot.slane %v794, 1
        %v796 = vadd.f32 %v794, %v795
        %v797 = vld [vmem:[%s344] sm:$0xff]
        %799 = vset.pattern.permute.xlu0 0
        %800 = vperm.xlu0 %799, %v797
        %v801 = vpop.permute.xlu0 %800
        %v802 = vrot.slane %v801, 1
        %v803 = vrot.slane %v801, 2
        %v804 = vrot.slane %v801, 3
        %v805 = vrot.slane %v801, 4
        %v806 = vrot.slane %v801, 5
        %v807 = vrot.slane %v801, 6
        %v808 = vrot.slane %v801, 7
        %v817 = vmul.f32 %v747, %v801
        %v818 = vmul.f32 %v754, %v802
        %v819 = vmul.f32 %v761, %v803
        %v820 = vmul.f32 %v768, %v804
        %v821 = vmul.f32 %v775, %v805
        %v822 = vmul.f32 %v782, %v806
        %v823 = vmul.f32 %v789, %v807
        %v824 = vmul.f32 %v796, %v808
        %v833 = vrot.slane %v818, 7
        %vm834 = vcmask 1041409
        %v835 = vsel %vm834, %v833, %v817
        %v836 = vrot.slane %v819, 6
        %vm837 = vcmask 1042434
        %v838 = vsel %vm837, %v836, %v835
        %v839 = vrot.slane %v820, 5
        %vm840 = vcmask 1043459
        %v841 = vsel %vm840, %v839, %v838
        %v842 = vrot.slane %v821, 4
        %vm843 = vcmask 1044484
        %v844 = vsel %vm843, %v842, %v841
        %v845 = vrot.slane %v822, 3
        %vm846 = vcmask 1045509
        %v847 = vsel %vm846, %v845, %v844
        %v848 = vrot.slane %v823, 2
        %vm849 = vcmask 1046534
        %v850 = vsel %vm849, %v848, %v847
        %v851 = vrot.slane %v824, 1
        %vm852 = vcmask 1047559
        %v853 = vsel %vm852, %v851, %v850
        %855 = vst.msk [vmem:[%s328] sm:$0xff] %vm417, %v853
        %s856 = sand.u32 %s213, 1
        %s857 = scalar_lea.sflag [#allocation3], %s856
        %s858 = sand.u32 %s213, 1
        %s859 = smul.addr %s858, 8
        %s860 = scalar_lea.vmem [#allocation2], %s859
        // Predicated region
        $region53: #{tpu_custom_call.1} parent=51 // pred_check
          %p861 = pneg %p223
        $region54: #{tpu_custom_call.1} parent=51 // pred_check_branch
          %863 = sbr.rel (%p861) target = $region56
        $region55: #{tpu_custom_call.1} parent=51 // pred_region
          %865 = vsyncadd %s857, 0
          %s866 = smul.addr %s22, 8
          %s867 = scalar_lea.hbm %s8, %s866
          %s869 = sshll.u32 %s860, 4
          %s870 = int_to_ptr.vmem [resolvable:$true] %s869
          %s871 = sshll.u32 %s867, 4
          %s872 = int_to_ptr.hbm [resolvable:$true] %s871
          %874 = dma.vmem_to_hbm [thread:$0]  %s870, 128, %s872, %s857
        $region56: #{tpu_custom_call.1} parent=51 // pred_fallthru
          _
      $region52: #{tpu_custom_call.1} parent=5 // pred_fallthru
        _
      %p875 = scmp.le.s32.totalorder 2, %s17
      // Predicated region
      $region57: #{tpu_custom_call.1} parent=5 // pred_check
        %p876 = pneg %p875
      $region58: #{tpu_custom_call.1} parent=5 // pred_check_branch
        %878 = sbr.rel (%p876) target = $region60
      $region59: #{tpu_custom_call.1} parent=5 // pred_region
        %s879 = ssub.s32 %s17, 2
        // Predicated region
        $region61: #{tpu_custom_call.1} parent=59 // pred_check
          %p880 = pneg %p229
        $region62: #{tpu_custom_call.1} parent=59 // pred_check_branch
          %882 = sbr.rel (%p880) target = $region64
        $region63: #{tpu_custom_call.1} parent=59 // pred_region
          %s883 = sand.u32 %s214, 1
          %s884 = scalar_lea.sflag [#allocation3], %s883
          %s885 = sand.u32 %s214, 1
          %s886 = smul.addr %s885, 8
          %s887 = scalar_lea.vmem [#allocation2], %s886
          %889 = dma.done %s884, 128
        $region64: #{tpu_custom_call.1} parent=59 // pred_fallthru
          _
      $region60: #{tpu_custom_call.1} parent=5 // pred_fallthru
        _
    $region6: #{tpu_custom_call.1} parent=1 // loop_footer
      %s21 = sadd.s32 1, %s17
    $region7: #{tpu_custom_call.1} parent=1 // loop_footer_branch
      %16 = sbr.rel target = $region3
    $region8: #{tpu_custom_call.1} parent=1 // loop_exit
      _
    %890 = vsyncpa [#allocation3], 1
    %s891 = scalar_lea.sflag [#allocation3], 1
    %892 = vsyncpa %s891, 1

</llo_original>
